<compile_context>
chip_gen: v7x
topology: tpu7x:2x2x1
jax: 0.10.0
libtpu: 0.0.40
codegen_flags: <defaults>
</compile_context>

<pallas_src>
import functools

import jax
import jax.numpy as jnp
from jax.experimental import pallas as pl
from jax.experimental.pallas import tpu as pltpu

N_COLOR_CHANNELS = 3

# Lane-tile upper bound (elements). 64K lanes -> ~12 MiB true double-buffered VMEM
# footprint (see budget above) and ~2.5 MB of HBM traffic per step, which amortizes the
# ~0.35 us per-step overhead even at v7x's 3.2 TB/s.
_MAX_LANE_TILE = 65536
# Target at least this many grid steps so v7x's two TensorCores both get work and the
# pipeline can double-buffer on every generation.
_MIN_GRID_STEPS = 8


def _pick_lane_tile(hw: int, n_batch: int) -> int:
    if hw <= 128:
        return hw                                   # full extent: always a legal lane block
    want_tiles = max(1, -(-_MIN_GRID_STEPS // n_batch))      # ceil(8 / N)
    tile = max(128, (hw // want_tiles) // 128 * 128)          # multiple of 128
    return min(tile, _MAX_LANE_TILE)                          # ragged tail block is OK


def _albedo_kernel(mask_ref, tex_ref, out_ref, *, n_color):
    # mask_ref: (1, K, T) int8   -- (pix_to_face >= 0) as 0/1, all K slots
    # tex_ref : (1, C, T) f32    -- K-slot-0 texels only, C = n_color + 1 (rgb + alpha)
    # out_ref : (1, n_color + K, T) f32
    mask = mask_ref[0].astype(out_ref.dtype)          # (K, T) 0.0 / 1.0
    tex = tex_ref[0]                                  # (C, T)

    img0 = tex * mask[0:1]                            # (C, T): only slot 0 is consumed
    alpha = img0[n_color:n_color + 1]                 # (1, T)

    # Single region store: [rgb ; valid_mask * alpha_mask] along the sublane axis.
    out_ref[0] = jnp.concatenate([img0[:n_color], mask * alpha], axis=0)


def albedo_shader(pix_to_face, texels, n_color=N_COLOR_CHANNELS, channels_last=True):
    """pix_to_face: (N, H, W, K) int32; texels: (N, H, W, K, C) float32.

    channels_last=True  -> (N, H, W, n_color + K), exactly the PyTorch forward.
    channels_last=False -> (N, n_color + K, H, W), same values, no final relayout pass
                           (use this when the consumer accepts channel-first; it removes
                           a full HBM read+write of the result).
    """
    N, H, W, K, C = texels.shape
    assert pix_to_face.shape == (N, H, W, K), pix_to_face.shape
    # The forward assumes exactly one alpha channel after the color channels.
    assert C == n_color + 1, f"expected C == n_color + 1, got C={C}, n_color={n_color}"
    out_c = n_color + K
    HW = H * W

    # Wrapper glue (each a single fused XLA pass):
    #  * slot-0 slice + channel-first transpose of the texels: reads only K-slot 0,
    #    writes (N, C, HW) once; never materializes an intermediate NHWC slice.
    tex_k = jnp.transpose(texels[:, :, :, 0, :], (0, 3, 1, 2)).reshape(N, C, HW)
    #  * compare + int8 narrowing fused into the mask transpose: 1 B/elem into the kernel.
    mask_k = jnp.transpose((pix_to_face >= 0).astype(jnp.int8),
                           (0, 3, 1, 2)).reshape(N, K, HW)

    tile = _pick_lane_tile(HW, N)
    grid = (N, pl.cdiv(HW, tile))

    # Advisory cost estimate so XLA can schedule/overlap the surrounding relayout passes.
    bytes_accessed = N * HW * (K * 1 + C * 4 + out_c * 4)
    flops = N * HW * (C + K)

    out = pl.pallas_call(
        functools.partial(_albedo_kernel, n_color=n_color),
        out_shape=jax.ShapeDtypeStruct((N, out_c, HW), texels.dtype),
        grid=grid,
        in_specs=[
            pl.BlockSpec((1, K, tile), lambda n, t: (n, 0, t)),
            pl.BlockSpec((1, C, tile), lambda n, t: (n, 0, t)),
        ],
        out_specs=pl.BlockSpec((1, out_c, tile), lambda n, t: (n, 0, t)),
        compiler_params=pltpu.CompilerParams(
            dimension_semantics=("parallel", "parallel"),
            vmem_limit_bytes=32 * 1024 * 1024),
        cost_estimate=pl.CostEstimate(flops=flops, transcendentals=0,
                                      bytes_accessed=bytes_accessed),
    )(mask_k, tex_k)

    out = out.reshape(N, out_c, H, W)
    if channels_last:
        # Exact PyTorch3D NHWC convention. This is one extra full HBM pass of the output;
        # callers that accept channel-first should pass channels_last=False.
        out = jnp.transpose(out, (0, 2, 3, 1))
    return out


def albedo_ref(pix_to_face, texels, n_color=N_COLOR_CHANNELS):
    """Pure-JAX reference mirroring the PyTorch forward exactly."""
    valid_mask = (pix_to_face >= 0).astype(texels.dtype)     # (N, H, W, K)
    images = texels * valid_mask[..., None]                   # (N, H, W, K, C)
    images = images[..., 0, :]                                # (N, H, W, C)
    alpha_mask = images[..., n_color:]                        # (N, H, W, 1)
    images = images[..., :n_color]                            # (N, H, W, 3)
    valid_mask = valid_mask * alpha_mask                      # (N, H, W, K)
    return jnp.concatenate([images, valid_mask], axis=-1)     # (N, H, W, 3 + K)


def _run_case(key, N, H, W, K, C):
    k_tex, k_pix = jax.random.split(key)
    texels = jax.random.uniform(k_tex, (N, H, W, K, C), dtype=jnp.float32)
    # pix_to_face in [-2, 5]: negative values mean "no face covers this pixel".
    pix_to_face = jax.random.randint(k_pix, (N, H, W, K), minval=-2, maxval=6,
                                     dtype=jnp.int32)
    ref = albedo_ref(pix_to_face, texels)

    out_nhwc = jax.block_until_ready(albedo_shader(pix_to_face, texels))
    assert out_nhwc.shape == (N, H, W, N_COLOR_CHANNELS + K), out_nhwc.shape
    assert jnp.allclose(out_nhwc, ref, atol=1e-6), "NHWC mismatch vs reference"

    out_cf = jax.block_until_ready(
        albedo_shader(pix_to_face, texels, channels_last=False))
    assert out_cf.shape == (N, N_COLOR_CHANNELS + K, H, W), out_cf.shape
    assert jnp.allclose(out_cf, jnp.transpose(ref, (0, 3, 1, 2)), atol=1e-6), \
        "channel-first mismatch vs reference"


if __name__ == "__main__":
    key = jax.random.PRNGKey(0)
    k0, k1 = jax.random.split(key)

    # Small primary case: batch=2, image 16x16, faces_per_pixel K=2, channels C=4 (rgb+alpha).
    _run_case(k0, N=2, H=16, W=16, K=2, C=N_COLOR_CHANNELS + 1)

    # Ragged-tail coverage: HW = 150 is not a multiple of the 128-lane tile, so the last
    # grid block along the lane axis is partial (exercises Pallas's output clipping).
    _run_case(k1, N=2, H=10, W=15, K=2, C=N_COLOR_CHANNELS + 1)

    print("KERNEL_OK")
</pallas_src>

<mosaic_0001>
module attributes {stable_mosaic.version = 11 : i64} {
  func.func @_albedo_kernel(%arg0: i32, %arg1: i32, %arg2: memref<1x2x128xi8, #tpu.memory_space<vmem>>, %arg3: memref<1x4x128xf32, #tpu.memory_space<vmem>>, %arg4: memref<1x5x128xf32, #tpu.memory_space<vmem>>) attributes {dimension_semantics = [#tpu.dimension_semantics<parallel>, #tpu.dimension_semantics<parallel>], iteration_bounds = array<i64: 2, 2>, scalar_prefetch = 0 : i64, scratch_operands = 0 : i64, tpu.core_type = #tpu.core_type<tc>, window_params = [{transform_indices = @transform_0, window_bounds = array<i64: 1, 2, 128>}, {transform_indices = @transform_1, window_bounds = array<i64: 1, 4, 128>}, {transform_indices = @transform_2, window_bounds = array<i64: 1, 5, 128>}]} {
    %c0 = arith.constant 0 : index
    %c0_0 = arith.constant 0 : index
    %c0_1 = arith.constant 0 : index
    %0 = vector.load %arg2[%c0, %c0_0, %c0_1] : memref<1x2x128xi8, #tpu.memory_space<vmem>>, vector<1x2x128xi8>
    %1 = vector.shape_cast %0 : vector<1x2x128xi8> to vector<2x128xi8>
    %2 = arith.sitofp %1 : vector<2x128xi8> to vector<2x128xf32>
    %c0_2 = arith.constant 0 : index
    %c0_3 = arith.constant 0 : index
    %c0_4 = arith.constant 0 : index
    %3 = vector.load %arg3[%c0_2, %c0_3, %c0_4] : memref<1x4x128xf32, #tpu.memory_space<vmem>>, vector<1x4x128xf32>
    %4 = vector.shape_cast %3 : vector<1x4x128xf32> to vector<4x128xf32>
    %5 = vector.extract_strided_slice %2 {offsets = [0, 0], sizes = [1, 128], strides = [1, 1]} : vector<2x128xf32> to vector<1x128xf32>
    %6 = vector.broadcast %5 : vector<1x128xf32> to vector<4x128xf32>
    %7 = arith.mulf %4, %6 : vector<4x128xf32>
    %8 = vector.extract_strided_slice %7 {offsets = [3, 0], sizes = [1, 128], strides = [1, 1]} : vector<4x128xf32> to vector<1x128xf32>
    %9 = vector.extract_strided_slice %7 {offsets = [0, 0], sizes = [3, 128], strides = [1, 1]} : vector<4x128xf32> to vector<3x128xf32>
    %10 = vector.broadcast %8 : vector<1x128xf32> to vector<2x128xf32>
    %11 = arith.mulf %2, %10 : vector<2x128xf32>
    %12 = tpu.concatenate %9, %11 in 0 : vector<3x128xf32>, vector<2x128xf32> -> vector<5x128xf32>
    %c0_5 = arith.constant 0 : index
    %c0_6 = arith.constant 0 : index
    %c0_7 = arith.constant 0 : index
    %13 = vector.load %arg4[%c0_5, %c0_6, %c0_7] : memref<1x5x128xf32, #tpu.memory_space<vmem>>, vector<1x5x128xf32>
    %14 = vector.shape_cast %13 : vector<1x5x128xf32> to vector<5x128xf32>
    %15 = vector.shape_cast %12 : vector<5x128xf32> to vector<1x5x128xf32>
    tpu.vector_store %arg4[%c0_5, %c0_6, %c0_7], %15 {strides = array<i32>} : memref<1x5x128xf32, #tpu.memory_space<vmem>>, vector<1x5x128xf32>,
    return
  }
  func.func @transform_0(%arg0: i32, %arg1: i32) -> (i32, i32, i32) {
    %c0_i32 = arith.constant 0 : i32
    %c0_i32_0 = arith.constant 0 : i32
    return %arg0, %c0_i32, %arg1 : i32, i32, i32
  }
  func.func @transform_1(%arg0: i32, %arg1: i32) -> (i32, i32, i32) {
    %c0_i32 = arith.constant 0 : i32
    %c0_i32_0 = arith.constant 0 : i32
    return %arg0, %c0_i32, %arg1 : i32, i32, i32
  }
  func.func @transform_2(%arg0: i32, %arg1: i32) -> (i32, i32, i32) {
    %c0_i32 = arith.constant 0 : i32
    %c0_i32_0 = arith.constant 0 : i32
    return %arg0, %c0_i32, %arg1 : i32, i32, i32
  }
}

</mosaic_0001>

<llo_original>
// kernel: tpu_custom_call.1
$region0: #{tpu_custom_call.1}
  #allocation0 [shape = 'u32[]', space=smem, size = 0x4, offset = 0x4, fixed_abs, tag = 'smem constant byte address 0x4 - core index']
  #allocation1 [shape = 'u32[144,128]{1,0:T(1,128)}', space=vmem, size = 0x12000, scoped, tag = 'internal scratch']
  %s0 = inlined_call_operand.hbm [shape: s8[2,2,256], index: 0, kind: input, shape index: {}]
  %s1 = inlined_call_operand.hbm [shape: f32[2,4,256], index: 1, kind: input, shape index: {}]
  %s2 = inlined_call_operand.vmem [shape: f32[2,5,256], index: 2, kind: output, shape index: {}]
  %s3 = sld [smem:[#allocation0]]
  $region49: #{tpu_custom_call.1} parent=0
    _
  %s5 = ssub.s32 1, %s3
  %s6 = scalar_select 0, %s5, %s3
  $region1: #{tpu_custom_call.1} parent=0
    #allocation2 [shape = 'u8[1024]{0}', space=vmem, size = 0x400, scoped, tag = 'input window, operand 0']
    #allocation3 [shape = 's32[2]{0}', space=sflag, size = 0x8, scoped, tag = 'scoped memory for tpu_custom_call.1']
    #allocation4 [shape = 'u8[4096]{0}', space=vmem, size = 0x1000, scoped, tag = 'input window, operand 1']
    #allocation5 [shape = 's32[2]{0}', space=sflag, size = 0x8, scoped, tag = 'scoped memory for tpu_custom_call.1']
    %7 = vsyncpa [#allocation3], 0
    %s8 = scalar_lea.sflag [#allocation3], 1
    %9 = vsyncpa %s8, 0
    %10 = vsyncpa [#allocation5], 0
    %s11 = scalar_lea.sflag [#allocation5], 1
    %12 = vsyncpa %s11, 0
    loop: start=0, step=1, limit=6
    $region2: #{tpu_custom_call.1} parent=1 // loop_pre_header
      _
    $region3: #{tpu_custom_call.1} parent=1 // loop_header
      %s14 = sphi 0, %s18
      %p15 = scmp.ge.s32.totalorder %s14, 6
      %s21 = sphi 0, %s33
      %s22 = sphi 0, %s29
      %s23 = sphi 0, %s21
      %s24 = sphi 0, %s22
      %s25 = sphi 0, %s23
      %s26 = sphi 0, %s24
      %s38 = sphi 0, %s40
      %s41 = sphi 0, %s38
      %s42 = sphi 0, %s41
      %s58 = sphi 0, %s42
      %s66 = sphi 0, %s68
      %s69 = sphi 0, %s66
      %s70 = sphi 0, %s69
      %s86 = sphi 0, %s70
      %s94 = sphi 0, %s96
      %s97 = sphi 0, %s94
      %s98 = sphi 0, %s97
      %s114 = sphi 0, %s98
    $region4: #{tpu_custom_call.1} parent=1 // loop_header_branch
      %17 = sbr.rel (%p15) target = $region8
    $region5: #{tpu_custom_call.1} parent=1 // loop_body
      %s19 = ssub.s32 %s14, 1
      %s20 = ssub.s32 %s14, 2
      %s27 = sadd.s32 1, %s22
      %p28 = scmp.ge.s32.totalorder %s27, 2
      %s29 = scalar_select %p28, 0, %s27
      %s30 = sadd.s32 1, %s21
      %s31 = scalar_select %p28, %s30, %s21
      %p32 = scmp.ge.s32.totalorder %s31, 2
      %s33 = scalar_select %p32, 0, %s31
      %s34 = ssub.s32 %s21, %s33
      %s35 = ssub.s32 %s22, %s29
      %s36 = sor.u32 %s34, %s35
      %p37 = scmp.eq.s32.totalorder %s36, 0
      %s39 = sadd.s32 %s38, 1
      %s40 = scalar_select %p37, %s38, %s39
      %p43 = pneg %p37
      %p44 = scmp.eq.s32.totalorder %s14, 3
      %p45 = por %p43, %p44
      %p46 = scmp.ne.s32.totalorder %s38, %s41
      %p47 = scmp.eq.s32.totalorder %s14, 0
      %p48 = por %p46, %p47
      %p49 = scmp.ne.s32.totalorder %s38, %s41
      %p50 = scmp.eq.s32.totalorder %s19, 3
      %p51 = por %p49, %p50
      %p52 = scmp.ne.s32.totalorder %s41, %s42
      %p53 = scmp.eq.s32.totalorder %s19, 0
      %p54 = por %p52, %p53
      %p55 = scmp.ne.s32.totalorder %s41, %s42
      %p56 = scmp.eq.s32.totalorder %s20, 3
      %p57 = por %p55, %p56
      %p59 = scmp.ne.s32.totalorder %s42, %s58
      %p60 = scmp.eq.s32.totalorder %s20, 0
      %p61 = por %p59, %p60
      %s62 = ssub.s32 %s21, %s33
      %s63 = ssub.s32 %s22, %s29
      %s64 = sor.u32 %s62, %s63
      %p65 = scmp.eq.s32.totalorder %s64, 0
      %s67 = sadd.s32 %s66, 1
      %s68 = scalar_select %p65, %s66, %s67
      %p71 = pneg %p65
      %p72 = scmp.eq.s32.totalorder %s14, 3
      %p73 = por %p71, %p72
      %p74 = scmp.ne.s32.totalorder %s66, %s69
      %p75 = scmp.eq.s32.totalorder %s14, 0
      %p76 = por %p74, %p75
      %p77 = scmp.ne.s32.totalorder %s66, %s69
      %p78 = scmp.eq.s32.totalorder %s19, 3
      %p79 = por %p77, %p78
      %p80 = scmp.ne.s32.totalorder %s69, %s70
      %p81 = scmp.eq.s32.totalorder %s19, 0
      %p82 = por %p80, %p81
      %p83 = scmp.ne.s32.totalorder %s69, %s70
      %p84 = scmp.eq.s32.totalorder %s20, 3
      %p85 = por %p83, %p84
      %p87 = scmp.ne.s32.totalorder %s70, %s86
      %p88 = scmp.eq.s32.totalorder %s20, 0
      %p89 = por %p87, %p88
      %s90 = ssub.s32 %s21, %s33
      %s91 = ssub.s32 %s22, %s29
      %s92 = sor.u32 %s90, %s91
      %p93 = scmp.eq.s32.totalorder %s92, 0
      %s95 = sadd.s32 %s94, 1
      %s96 = scalar_select %p93, %s94, %s95
      %p99 = pneg %p93
      %p100 = scmp.eq.s32.totalorder %s14, 3
      %p101 = por %p99, %p100
      %p102 = scmp.ne.s32.totalorder %s94, %s97
      %p103 = scmp.eq.s32.totalorder %s14, 0
      %p104 = por %p102, %p103
      %p105 = scmp.ne.s32.totalorder %s94, %s97
      %p106 = scmp.eq.s32.totalorder %s19, 3
      %p107 = por %p105, %p106
      %p108 = scmp.ne.s32.totalorder %s97, %s98
      %p109 = scmp.eq.s32.totalorder %s19, 0
      %p110 = por %p108, %p109
      %p111 = scmp.ne.s32.totalorder %s97, %s98
      %p112 = scmp.eq.s32.totalorder %s20, 3
      %p113 = por %p111, %p112
      %p115 = scmp.ne.s32.totalorder %s98, %s114
      %p116 = scmp.eq.s32.totalorder %s20, 0
      %p117 = por %p115, %p116
      %p118 = scmp.le.s32.totalorder 1, %s14
      %p119 = scmp.lt.s32.totalorder %s14, 5
      %p120 = pnand %p118, %p119
      %p121 = pneg %p120
      // Predicated region
      $region9: #{tpu_custom_call.1} parent=5 // pred_check
        _
      $region10: #{tpu_custom_call.1} parent=5 // pred_check_branch
        %123 = sbr.rel (%p120) target = $region12
      $region11: #{tpu_custom_call.1} parent=5 // pred_region
        %s124 = ssub.s32 %s14, 1
      $region12: #{tpu_custom_call.1} parent=5 // pred_fallthru
        _
      %p125 = scmp.lt.s32.totalorder %s14, 4
      // Predicated region
      $region13: #{tpu_custom_call.1} parent=5 // pred_check
        %p126 = pneg %p125
      $region14: #{tpu_custom_call.1} parent=5 // pred_check_branch
        %128 = sbr.rel (%p126) target = $region16
      $region15: #{tpu_custom_call.1} parent=5 // pred_region
        // Predicated region
        $region17: #{tpu_custom_call.1} parent=15 // pred_check
          %p129 = pneg %p48
        $region18: #{tpu_custom_call.1} parent=15 // pred_check_branch
          %131 = sbr.rel (%p129) target = $region20
        $region19: #{tpu_custom_call.1} parent=15 // pred_region
          %s132 = sand.u32 %s38, 1
          %s133 = scalar_lea.sflag [#allocation3], %s132
          %s134 = sand.u32 %s38, 1
          %s135 = scalar_lea.vmem [#allocation2], %s134
          %s137 = ssub.s32 16, 16
          %138 = vsyncadd %s133, %s137
          %s139 = smul.addr %s21, 2
          %s140 = sadd.s32 %s22, %s139
          %s141 = smul.addr %s140, 16
          %s142 = scalar_lea.hbm %s0, %s141
          %s144 = sshll.u32 %s135, 4
          %s145 = int_to_ptr.vmem [resolvable:$true] %s144
          %147 = dma.hbm_to_vmem [thread:$0]  %s142, 16, %s145, %s133
        $region20: #{tpu_custom_call.1} parent=15 // pred_fallthru
          _
        // Predicated region
        $region21: #{tpu_custom_call.1} parent=15 // pred_check
          %p148 = pneg %p76
        $region22: #{tpu_custom_call.1} parent=15 // pred_check_branch
          %150 = sbr.rel (%p148) target = $region24
        $region23: #{tpu_custom_call.1} parent=15 // pred_region
          %s151 = sand.u32 %s66, 1
          %s152 = scalar_lea.sflag [#allocation5], %s151
          %s153 = sand.u32 %s66, 1
          %s154 = smul.addr %s153, 4
          %s155 = scalar_lea.vmem [#allocation4], %s154
          %s157 = ssub.s32 64, 64
          %158 = vsyncadd %s152, %s157
          %s159 = smul.addr %s21, 2
          %s160 = sadd.s32 %s22, %s159
          %s161 = smul.addr %s160, 64
          %s162 = scalar_lea.hbm %s1, %s161
          %s164 = sshll.u32 %s155, 4
          %s165 = int_to_ptr.vmem [resolvable:$true] %s164
          %167 = dma.hbm_to_vmem [thread:$0]  %s162, 64, %s165, %s152
        $region24: #{tpu_custom_call.1} parent=15 // pred_fallthru
          _
      $region16: #{tpu_custom_call.1} parent=5 // pred_fallthru
        _
      %p168 = scmp.le.s32.totalorder 1, %s14
      %p169 = scmp.lt.s32.totalorder %s14, 5
      %p170 = pnand %p168, %p169
      %p171 = pneg %p170
      // Predicated region
      $region25: #{tpu_custom_call.1} parent=5 // pred_check
        _
      $region26: #{tpu_custom_call.1} parent=5 // pred_check_branch
        %173 = sbr.rel (%p170) target = $region28
      $region27: #{tpu_custom_call.1} parent=5 // pred_region
        %s174 = ssub.s32 %s14, 1
        %s175 = sand.u32 %s41, 1
        %s176 = scalar_lea.sflag [#allocation3], %s175
        %s177 = sand.u32 %s41, 1
        %s178 = scalar_lea.vmem [#allocation2], %s177
        // Predicated region
        $region29: #{tpu_custom_call.1} parent=27 // pred_check
          %p179 = pneg %p54
        $region30: #{tpu_custom_call.1} parent=27 // pred_check_branch
          %181 = sbr.rel (%p179) target = $region32
        $region31: #{tpu_custom_call.1} parent=27 // pred_region
          %182 = dma.done %s176, 16
        $region32: #{tpu_custom_call.1} parent=27 // pred_fallthru
          _
        %s183 = sand.u32 %s69, 1
        %s184 = scalar_lea.sflag [#allocation5], %s183
        %s185 = sand.u32 %s69, 1
        %s186 = smul.addr %s185, 4
        %s187 = scalar_lea.vmem [#allocation4], %s186
        // Predicated region
        $region33: #{tpu_custom_call.1} parent=27 // pred_check
          %p188 = pneg %p82
        $region34: #{tpu_custom_call.1} parent=27 // pred_check_branch
          %190 = sbr.rel (%p188) target = $region36
        $region35: #{tpu_custom_call.1} parent=27 // pred_region
          %191 = dma.done %s184, 64
        $region36: #{tpu_custom_call.1} parent=27 // pred_fallthru
          _
        %s192 = sand.u32 %s41, 1
        %s193 = scalar_lea.sflag [#allocation3], %s192
        %s194 = sand.u32 %s41, 1
        %s195 = scalar_lea.vmem [#allocation2], %s194
        %p196 = pneg %p54
        %p197 = pneg %p51
        %s198 = sand.u32 %s69, 1
        %s199 = scalar_lea.sflag [#allocation5], %s198
        %s200 = sand.u32 %s69, 1
        %s201 = smul.addr %s200, 4
        %s202 = scalar_lea.vmem [#allocation4], %s201
        %p203 = pneg %p82
        %p204 = pneg %p79
        %p205 = pneg %p110
        %p206 = pneg %p107
        %p207 = scmp.lt.s32.totalorder %s23, 1
        %s208 = scalar_select %p207, %s23, 1
        %p209 = scmp.lt.s32.totalorder %s24, 1
        %s210 = scalar_select %p209, %s24, 1
        %s211 = smul.addr %s208, 2
        %s212 = sadd.s32 %s210, %s211
        %s213 = smul.addr %s212, 8
        %s214 = scalar_lea.vmem %s2, %s213
        %p215 = scmp.lt.s32.totalorder %s23, 1
        %s216 = scalar_select %p215, %s23, 1
        %p217 = scmp.lt.s32.totalorder %s24, 1
        %s218 = scalar_select %p217, %s24, 1
        %s219 = smul.addr %s216, 2
        %s220 = sadd.s32 %s218, %s219
        %s221 = smul.addr %s220, 8
        %s222 = scalar_lea.vmem %s2, %s221
        %v223 = vld [vmem:[%s178] sm:$0x1]
        %v224 = vunpack.c.0.s8 %v223
        %v225 = vcvt.s32.f32 %v224
        %v226 = vld [vmem:[%s187] sm:$0xf]
        %v227 = vlaneseq
        %v228 = vshrl.u32 %v227, 7
        %v229 = vsub.s32 0, %v228
        %v230 = vrot.slane %v225, %v229
        %v231 = vmul.f32 %v226, %v230
        %v232 = vlaneseq
        %v233 = vshrl.u32 %v232, 7
        %v234 = vsub.s32 3, %v233
        %v235 = vrot.slane %v231, %v234
        %v236 = vmul.f32 %v225, %v235
        %v238 = vrot.slane %v236, 5
        %vm240 = vcmask 1042432
        %v241 = vsel %vm240, %v231, %v238
        %242 = vst [vmem:[%s222] sm:$0x1f] %v241
        %p243 = scmp.lt.s32.totalorder %s23, 1
        %s244 = scalar_select %p243, %s23, 1
        %p245 = scmp.lt.s32.totalorder %s24, 1
        %s246 = scalar_select %p245, %s24, 1
        %s247 = smul.addr %s244, 2
        %s248 = sadd.s32 %s246, %s247
        %s249 = smul.addr %s248, 8
        %s250 = scalar_lea.vmem %s2, %s249
        // Predicated region
        $region37: #{tpu_custom_call.1} parent=27 // pred_check
          %p251 = pneg %p107
        $region38: #{tpu_custom_call.1} parent=27 // pred_check_branch
          %253 = sbr.rel (%p251) target = $region40
        $region39: #{tpu_custom_call.1} parent=27 // pred_region
          _
        $region40: #{tpu_custom_call.1} parent=27 // pred_fallthru
          _
      $region28: #{tpu_custom_call.1} parent=5 // pred_fallthru
        _
      %p254 = scmp.le.s32.totalorder 2, %s14
      // Predicated region
      $region41: #{tpu_custom_call.1} parent=5 // pred_check
        %p255 = pneg %p254
      $region42: #{tpu_custom_call.1} parent=5 // pred_check_branch
        %257 = sbr.rel (%p255) target = $region44
      $region43: #{tpu_custom_call.1} parent=5 // pred_region
        %s258 = ssub.s32 %s14, 2
        // Predicated region
        $region45: #{tpu_custom_call.1} parent=43 // pred_check
          %p259 = pneg %p113
        $region46: #{tpu_custom_call.1} parent=43 // pred_check_branch
          %261 = sbr.rel (%p259) target = $region48
        $region47: #{tpu_custom_call.1} parent=43 // pred_region
          %p262 = scmp.lt.s32.totalorder %s25, 1
          %s263 = scalar_select %p262, %s25, 1
          %p264 = scmp.lt.s32.totalorder %s26, 1
          %s265 = scalar_select %p264, %s26, 1
          %s266 = smul.addr %s263, 2
          %s267 = sadd.s32 %s265, %s266
          %s268 = smul.addr %s267, 8
          %s269 = scalar_lea.vmem %s2, %s268
        $region48: #{tpu_custom_call.1} parent=43 // pred_fallthru
          _
      $region44: #{tpu_custom_call.1} parent=5 // pred_fallthru
        _
    $region6: #{tpu_custom_call.1} parent=1 // loop_footer
      %s18 = sadd.s32 1, %s14
    $region7: #{tpu_custom_call.1} parent=1 // loop_footer_branch
      %13 = sbr.rel target = $region3
    $region8: #{tpu_custom_call.1} parent=1 // loop_exit
      _
    %270 = vsyncpa [#allocation3], 1
    %s271 = scalar_lea.sflag [#allocation3], 1
    %272 = vsyncpa %s271, 1
    %273 = vsyncpa [#allocation5], 1
    %s274 = scalar_lea.sflag [#allocation5], 1
    %275 = vsyncpa %s274, 1

</llo_original>
